<compile_context>
chip_gen: v7x
topology: tpu7x:2x2x1
jax: 0.10.0
libtpu: 0.0.40
codegen_flags: <defaults>
</compile_context>

<pallas_src>
import functools

import jax
import jax.numpy as jnp
from jax.experimental import pallas as pl
from jax.experimental.pallas import tpu as pltpu

_NEG_SLOPE = 0.01  # torch.nn.functional.leaky_relu default


def _leaky_relu(v):
    return jnp.where(v > 0, v, _NEG_SLOPE * v)


def _round_up(n, m):
    return ((n + m - 1) // m) * m


def mlp_kernel(x_ref,
               w1_ref, b1_ref,
               w2_ref, b2_ref,
               w3_ref, b3_ref,
               w4_ref, b4_ref,
               w5t_ref, b5_ref,
               o_ref):
    # Whole 5-layer MLP fused per batch tile.
    # x arrives f32; cast to the matmul dtype in-kernel (no wrapper HBM round trip).
    # All matmuls accumulate in f32 on the MXU; bias add + LeakyReLU stay f32.
    x = x_ref[...].astype(w1_ref.dtype)
    h = _leaky_relu(jnp.dot(x, w1_ref[...],
                            preferred_element_type=jnp.float32) + b1_ref[...])
    h = _leaky_relu(jnp.dot(h.astype(w2_ref.dtype), w2_ref[...],
                            preferred_element_type=jnp.float32) + b2_ref[...])
    h = _leaky_relu(jnp.dot(h.astype(w3_ref.dtype), w3_ref[...],
                            preferred_element_type=jnp.float32) + b3_ref[...])
    h = _leaky_relu(jnp.dot(h.astype(w4_ref.dtype), w4_ref[...],
                            preferred_element_type=jnp.float32) + b4_ref[...])
    # Final layer: an N=1 MXU pass wastes nearly all MXU columns and the 1-lane output
    # is masked anyway, so do it on the VPU + cross-lane reduce in f32.
    # w5t_ref: (1, 64) f32, b5_ref: (1, 1) f32.
    out = jnp.sum(h * w5t_ref[...], axis=-1, keepdims=True) + b5_ref[...]
    o_ref[...] = out.astype(o_ref.dtype)


@functools.partial(jax.jit, static_argnames=("block_m", "use_bf16"))
def regression_forward(x, params, block_m=1024, use_bf16=True):
    """x: [B, 49] float32 -> [B, 1] float32."""
    B, D_in = x.shape
    (w1, b1), (w2, b2), (w3, b3), (w4, b4), (w5, b5) = params
    assert D_in == w1.shape[0]

    # --- host-side prep (cheap / fusable) ----------------------------------
    # Pad layer-1 contraction K: 49 -> 64 with zero columns/rows (numerically free).
    k_pad = _round_up(D_in, 64)
    if k_pad != D_in:
        x_p = jnp.pad(x, ((0, 0), (0, k_pad - D_in)))
        w1_p = jnp.pad(w1, ((0, k_pad - D_in), (0, 0)))
    else:
        x_p, w1_p = x, w1

    # Batch tile: as big as block_m allows (amortize ~0.35us/step), but capped so the
    # parallel grid keeps >= 2 steps whenever B allows (v7x has 2 TensorCores and only
    # the parallel axis shards across them).  Always a multiple of 8 (sublane rule).
    bm = min(block_m, _round_up(pl.cdiv(max(B, 16), 2), 8))
    grid_m = pl.cdiv(B, bm)  # ragged last block: edge rows computed, writeback clipped

    # bf16 matmul operands for layers 1-4 (f32 accumulation in-kernel); x itself is
    # passed f32 and cast in-kernel.  Layer 5 stays f32; w5 pre-transposed to (1, 64).
    mm_dtype = jnp.bfloat16 if use_bf16 else jnp.float32
    w1_m = w1_p.astype(mm_dtype)
    w2_m = w2.astype(mm_dtype)
    w3_m = w3.astype(mm_dtype)
    w4_m = w4.astype(mm_dtype)
    w5_t = w5.reshape(1, -1).astype(jnp.float32)        # (64, 1) -> (1, 64)
    b5_m = b5.reshape(1, 1).astype(jnp.float32)

    def full_spec(shape):
        # Constant block index: array stays VMEM-resident across all grid steps.
        return pl.BlockSpec(shape, lambda i: (0, 0))

    in_specs = [
        pl.BlockSpec((bm, k_pad), lambda i: (i, 0)),     # x tile over batch (f32)
        full_spec(w1_m.shape), full_spec(b1.shape),
        full_spec(w2_m.shape), full_spec(b2.shape),
        full_spec(w3_m.shape), full_spec(b3.shape),
        full_spec(w4_m.shape), full_spec(b4.shape),
        full_spec(w5_t.shape), full_spec(b5_m.shape),
    ]
    out_specs = pl.BlockSpec((bm, 1), lambda i: (i, 0))

    out = pl.pallas_call(
        mlp_kernel,
        out_shape=jax.ShapeDtypeStruct((B, 1), jnp.float32),
        grid_spec=pltpu.PrefetchScalarGridSpec(
            num_scalar_prefetch=0,
            grid=(grid_m,),
            in_specs=in_specs,
            out_specs=out_specs,
        ),
        compiler_params=pltpu.CompilerParams(
            dimension_semantics=("parallel",)),
    )(x_p, w1_m, b1, w2_m, b2, w3_m, b3, w4_m, b4, w5_t, b5_m)

    return out


def init_params(key):
    """Deterministic init mimicking nn.Linear default (uniform +/- 1/sqrt(fan_in))."""
    dims = [(49, 128), (128, 128), (128, 128), (128, 64), (64, 1)]
    params = []
    for (fan_in, fan_out) in dims:
        key, kw, kb = jax.random.split(key, 3)
        bound = 1.0 / jnp.sqrt(fan_in)
        # stored as [in, out] so the kernel computes x @ W
        w = jax.random.uniform(kw, (fan_in, fan_out), jnp.float32, -bound, bound)
        b = jax.random.uniform(kb, (1, fan_out), jnp.float32, -bound, bound)
        params.append((w, b))
    return params


def reference_forward(x, params):
    """Pure f32 reference matching the PyTorch module semantics."""
    h = x
    for i, (w, b) in enumerate(params):
        h = h @ w + b
        if i < len(params) - 1:
            h = jnp.where(h > 0, h, _NEG_SLOPE * h)
    return h


if __name__ == "__main__":
    key = jax.random.PRNGKey(0)
    key, kx = jax.random.split(key)
    params = init_params(key)

    # 1) small batch, full-f32 path: must match the PyTorch-equivalent reference tightly.
    x_small = jax.random.normal(kx, (8, 49), jnp.float32)
    out_small = jax.block_until_ready(
        regression_forward(x_small, params, use_bf16=False))
    ref_small = reference_forward(x_small, params)
    assert out_small.shape == (8, 1)
    assert jnp.allclose(out_small, ref_small, atol=1e-5, rtol=1e-5), \
        "f32 kernel mismatch vs reference"

    # 2) larger non-divisible batch, default bf16-operand path:
    #    bm=256, grid=2 ("parallel" -> both v7x TCs), ragged last block of 244 rows.
    key, kx2 = jax.random.split(key)
    x_big = jax.random.normal(kx2, (500, 49), jnp.float32)
    out_big = jax.block_until_ready(
        regression_forward(x_big, params))
    ref_big = reference_forward(x_big, params)
    assert out_big.shape == (500, 1)
    assert jnp.allclose(out_big, ref_big, atol=2e-2, rtol=2e-2), \
        "bf16 kernel mismatch vs f32 reference"

    print("KERNEL_OK")
</pallas_src>

<mosaic_0001>
module attributes {stable_mosaic.version = 11 : i64} {
  func.func @mlp_kernel(%arg0: i32, %arg1: memref<8x64xf32, #tpu.memory_space<vmem>>, %arg2: memref<64x128xf32, #tpu.memory_space<vmem>>, %arg3: memref<1x128xf32, #tpu.memory_space<vmem>>, %arg4: memref<128x128xf32, #tpu.memory_space<vmem>>, %arg5: memref<1x128xf32, #tpu.memory_space<vmem>>, %arg6: memref<128x128xf32, #tpu.memory_space<vmem>>, %arg7: memref<1x128xf32, #tpu.memory_space<vmem>>, %arg8: memref<128x64xf32, #tpu.memory_space<vmem>>, %arg9: memref<1x64xf32, #tpu.memory_space<vmem>>, %arg10: memref<1x64xf32, #tpu.memory_space<vmem>>, %arg11: memref<1x1xf32, #tpu.memory_space<vmem>>, %arg12: memref<8x1xf32, #tpu.memory_space<vmem>>) attributes {dimension_semantics = [#tpu.dimension_semantics<parallel>], iteration_bounds = array<i64: 1>, scalar_prefetch = 0 : i64, scratch_operands = 0 : i64, tpu.core_type = #tpu.core_type<tc>, window_params = [{transform_indices = @transform_0, window_bounds = array<i64: 8, 64>}, {pipeline_mode = #tpu.pipeline_mode<synchronous>, transform_indices = @transform_1, window_bounds = array<i64: 64, 128>}, {pipeline_mode = #tpu.pipeline_mode<synchronous>, transform_indices = @transform_2, window_bounds = array<i64: 1, 128>}, {pipeline_mode = #tpu.pipeline_mode<synchronous>, transform_indices = @transform_3, window_bounds = array<i64: 128, 128>}, {pipeline_mode = #tpu.pipeline_mode<synchronous>, transform_indices = @transform_4, window_bounds = array<i64: 1, 128>}, {pipeline_mode = #tpu.pipeline_mode<synchronous>, transform_indices = @transform_5, window_bounds = array<i64: 128, 128>}, {pipeline_mode = #tpu.pipeline_mode<synchronous>, transform_indices = @transform_6, window_bounds = array<i64: 1, 128>}, {pipeline_mode = #tpu.pipeline_mode<synchronous>, transform_indices = @transform_7, window_bounds = array<i64: 128, 64>}, {pipeline_mode = #tpu.pipeline_mode<synchronous>, transform_indices = @transform_8, window_bounds = array<i64: 1, 64>}, {pipeline_mode = #tpu.pipeline_mode<synchronous>, transform_indices = @transform_9, window_bounds = array<i64: 1, 64>}, {pipeline_mode = #tpu.pipeline_mode<synchronous>, transform_indices = @transform_10, window_bounds = array<i64: 1, 1>}, {transform_indices = @transform_11, window_bounds = array<i64: 8, 1>}]} {
    %c0 = arith.constant 0 : index
    %c0_0 = arith.constant 0 : index
    %0 = vector.load %arg1[%c0, %c0_0] : memref<8x64xf32, #tpu.memory_space<vmem>>, vector<8x64xf32>
    %c0_1 = arith.constant 0 : index
    %c0_2 = arith.constant 0 : index
    %1 = vector.load %arg2[%c0_1, %c0_2] : memref<64x128xf32, #tpu.memory_space<vmem>>, vector<64x128xf32>
    %cst = arith.constant dense<0.000000e+00> : vector<8x128xf32>
    %2 = tpu.matmul %0, %1, %cst {dimension_numbers = #tpu.dot_dimension_numbers<[1], [0], [0], [1], [0, 0, 1, 1], [], []>} : vector<8x64xf32>, vector<64x128xf32>, vector<8x128xf32> -> vector<8x128xf32>
    %c0_3 = arith.constant 0 : index
    %c0_4 = arith.constant 0 : index
    %3 = vector.load %arg3[%c0_3, %c0_4] : memref<1x128xf32, #tpu.memory_space<vmem>>, vector<1x128xf32>
    %4 = vector.broadcast %3 : vector<1x128xf32> to vector<8x128xf32>
    %5 = arith.addf %2, %4 : vector<8x128xf32>
    %cst_5 = arith.constant 0.000000e+00 : f32
    %6 = vector.broadcast %cst_5 : f32 to vector<8x128xf32>
    %7 = arith.cmpf ogt, %5, %6 : vector<8x128xf32>
    %cst_6 = arith.constant 0.00999999977 : f32
    %8 = vector.broadcast %cst_6 : f32 to vector<8x128xf32>
    %9 = arith.mulf %8, %5 : vector<8x128xf32>
    %10 = arith.select %7, %5, %9 : vector<8x128xi1>, vector<8x128xf32>
    %c0_7 = arith.constant 0 : index
    %c0_8 = arith.constant 0 : index
    %11 = vector.load %arg4[%c0_7, %c0_8] : memref<128x128xf32, #tpu.memory_space<vmem>>, vector<128x128xf32>
    %cst_9 = arith.constant dense<0.000000e+00> : vector<8x128xf32>
    %12 = tpu.matmul %10, %11, %cst_9 {dimension_numbers = #tpu.dot_dimension_numbers<[1], [0], [0], [1], [0, 0, 1, 1], [], []>} : vector<8x128xf32>, vector<128x128xf32>, vector<8x128xf32> -> vector<8x128xf32>
    %c0_10 = arith.constant 0 : index
    %c0_11 = arith.constant 0 : index
    %13 = vector.load %arg5[%c0_10, %c0_11] : memref<1x128xf32, #tpu.memory_space<vmem>>, vector<1x128xf32>
    %14 = vector.broadcast %13 : vector<1x128xf32> to vector<8x128xf32>
    %15 = arith.addf %12, %14 : vector<8x128xf32>
    %cst_12 = arith.constant 0.000000e+00 : f32
    %16 = vector.broadcast %cst_12 : f32 to vector<8x128xf32>
    %17 = arith.cmpf ogt, %15, %16 : vector<8x128xf32>
    %cst_13 = arith.constant 0.00999999977 : f32
    %18 = vector.broadcast %cst_13 : f32 to vector<8x128xf32>
    %19 = arith.mulf %18, %15 : vector<8x128xf32>
    %20 = arith.select %17, %15, %19 : vector<8x128xi1>, vector<8x128xf32>
    %c0_14 = arith.constant 0 : index
    %c0_15 = arith.constant 0 : index
    %21 = vector.load %arg6[%c0_14, %c0_15] : memref<128x128xf32, #tpu.memory_space<vmem>>, vector<128x128xf32>
    %cst_16 = arith.constant dense<0.000000e+00> : vector<8x128xf32>
    %22 = tpu.matmul %20, %21, %cst_16 {dimension_numbers = #tpu.dot_dimension_numbers<[1], [0], [0], [1], [0, 0, 1, 1], [], []>} : vector<8x128xf32>, vector<128x128xf32>, vector<8x128xf32> -> vector<8x128xf32>
    %c0_17 = arith.constant 0 : index
    %c0_18 = arith.constant 0 : index
    %23 = vector.load %arg7[%c0_17, %c0_18] : memref<1x128xf32, #tpu.memory_space<vmem>>, vector<1x128xf32>
    %24 = vector.broadcast %23 : vector<1x128xf32> to vector<8x128xf32>
    %25 = arith.addf %22, %24 : vector<8x128xf32>
    %cst_19 = arith.constant 0.000000e+00 : f32
    %26 = vector.broadcast %cst_19 : f32 to vector<8x128xf32>
    %27 = arith.cmpf ogt, %25, %26 : vector<8x128xf32>
    %cst_20 = arith.constant 0.00999999977 : f32
    %28 = vector.broadcast %cst_20 : f32 to vector<8x128xf32>
    %29 = arith.mulf %28, %25 : vector<8x128xf32>
    %30 = arith.select %27, %25, %29 : vector<8x128xi1>, vector<8x128xf32>
    %c0_21 = arith.constant 0 : index
    %c0_22 = arith.constant 0 : index
    %31 = vector.load %arg8[%c0_21, %c0_22] : memref<128x64xf32, #tpu.memory_space<vmem>>, vector<128x64xf32>
    %cst_23 = arith.constant dense<0.000000e+00> : vector<8x64xf32>
    %32 = tpu.matmul %30, %31, %cst_23 {dimension_numbers = #tpu.dot_dimension_numbers<[1], [0], [0], [1], [0, 0, 1, 1], [], []>} : vector<8x128xf32>, vector<128x64xf32>, vector<8x64xf32> -> vector<8x64xf32>
    %c0_24 = arith.constant 0 : index
    %c0_25 = arith.constant 0 : index
    %33 = vector.load %arg9[%c0_24, %c0_25] : memref<1x64xf32, #tpu.memory_space<vmem>>, vector<1x64xf32>
    %34 = vector.broadcast %33 : vector<1x64xf32> to vector<8x64xf32>
    %35 = arith.addf %32, %34 : vector<8x64xf32>
    %cst_26 = arith.constant 0.000000e+00 : f32
    %36 = vector.broadcast %cst_26 : f32 to vector<8x64xf32>
    %37 = arith.cmpf ogt, %35, %36 : vector<8x64xf32>
    %cst_27 = arith.constant 0.00999999977 : f32
    %38 = vector.broadcast %cst_27 : f32 to vector<8x64xf32>
    %39 = arith.mulf %38, %35 : vector<8x64xf32>
    %40 = arith.select %37, %35, %39 : vector<8x64xi1>, vector<8x64xf32>
    %c0_28 = arith.constant 0 : index
    %c0_29 = arith.constant 0 : index
    %41 = vector.load %arg10[%c0_28, %c0_29] : memref<1x64xf32, #tpu.memory_space<vmem>>, vector<1x64xf32>
    %42 = vector.broadcast %41 : vector<1x64xf32> to vector<8x64xf32>
    %43 = arith.mulf %40, %42 : vector<8x64xf32>
    %cst_30 = arith.constant dense<0.000000e+00> : vector<8xf32>
    %44 = vector.multi_reduction <add>, %43, %cst_30 [1] : vector<8x64xf32> to vector<8xf32>
    %45 = vector.shape_cast %44 : vector<8xf32> to vector<8x1xf32>
    %c0_31 = arith.constant 0 : index
    %c0_32 = arith.constant 0 : index
    %46 = vector.load %arg11[%c0_31, %c0_32] : memref<1x1xf32, #tpu.memory_space<vmem>>, vector<1x1xf32>
    %47 = vector.broadcast %46 : vector<1x1xf32> to vector<8x1xf32>
    %48 = arith.addf %45, %47 : vector<8x1xf32>
    %c0_33 = arith.constant 0 : index
    %c0_34 = arith.constant 0 : index
    %49 = vector.load %arg12[%c0_33, %c0_34] : memref<8x1xf32, #tpu.memory_space<vmem>>, vector<8x1xf32>
    tpu.vector_store %arg12[%c0_33, %c0_34], %48 {strides = array<i32>} : memref<8x1xf32, #tpu.memory_space<vmem>>, vector<8x1xf32>,
    return
  }
  func.func @transform_0(%arg0: i32) -> (i32, i32) {
    %c0_i32 = arith.constant 0 : i32
    %c0_i32_0 = arith.constant 0 : i32
    return %arg0, %c0_i32 : i32, i32
  }
  func.func @transform_1(%arg0: i32) -> (i32, i32) {
    %c0_i32 = arith.constant 0 : i32
    %c0_i32_0 = arith.constant 0 : i32
    %c0_i32_1 = arith.constant 0 : i32
    return %c0_i32, %c0_i32_0 : i32, i32
  }
  func.func @transform_2(%arg0: i32) -> (i32, i32) {
    %c0_i32 = arith.constant 0 : i32
    %c0_i32_0 = arith.constant 0 : i32
    %c0_i32_1 = arith.constant 0 : i32
    return %c0_i32, %c0_i32_0 : i32, i32
  }
  func.func @transform_3(%arg0: i32) -> (i32, i32) {
    %c0_i32 = arith.constant 0 : i32
    %c0_i32_0 = arith.constant 0 : i32
    %c0_i32_1 = arith.constant 0 : i32
    return %c0_i32, %c0_i32_0 : i32, i32
  }
  func.func @transform_4(%arg0: i32) -> (i32, i32) {
    %c0_i32 = arith.constant 0 : i32
    %c0_i32_0 = arith.constant 0 : i32
    %c0_i32_1 = arith.constant 0 : i32
    return %c0_i32, %c0_i32_0 : i32, i32
  }
  func.func @transform_5(%arg0: i32) -> (i32, i32) {
    %c0_i32 = arith.constant 0 : i32
    %c0_i32_0 = arith.constant 0 : i32
    %c0_i32_1 = arith.constant 0 : i32
    return %c0_i32, %c0_i32_0 : i32, i32
  }
  func.func @transform_6(%arg0: i32) -> (i32, i32) {
    %c0_i32 = arith.constant 0 : i32
    %c0_i32_0 = arith.constant 0 : i32
    %c0_i32_1 = arith.constant 0 : i32
    return %c0_i32, %c0_i32_0 : i32, i32
  }
  func.func @transform_7(%arg0: i32) -> (i32, i32) {
    %c0_i32 = arith.constant 0 : i32
    %c0_i32_0 = arith.constant 0 : i32
    %c0_i32_1 = arith.constant 0 : i32
    return %c0_i32, %c0_i32_0 : i32, i32
  }
  func.func @transform_8(%arg0: i32) -> (i32, i32) {
    %c0_i32 = arith.constant 0 : i32
    %c0_i32_0 = arith.constant 0 : i32
    %c0_i32_1 = arith.constant 0 : i32
    return %c0_i32, %c0_i32_0 : i32, i32
  }
  func.func @transform_9(%arg0: i32) -> (i32, i32) {
    %c0_i32 = arith.constant 0 : i32
    %c0_i32_0 = arith.constant 0 : i32
    %c0_i32_1 = arith.constant 0 : i32
    return %c0_i32, %c0_i32_0 : i32, i32
  }
  func.func @transform_10(%arg0: i32) -> (i32, i32) {
    %c0_i32 = arith.constant 0 : i32
    %c0_i32_0 = arith.constant 0 : i32
    %c0_i32_1 = arith.constant 0 : i32
    return %c0_i32, %c0_i32_0 : i32, i32
  }
  func.func @transform_11(%arg0: i32) -> (i32, i32) {
    %c0_i32 = arith.constant 0 : i32
    %c0_i32_0 = arith.constant 0 : i32
    return %arg0, %c0_i32 : i32, i32
  }
}

</mosaic_0001>

<llo_original>
// kernel: regression_forward.1
$region0: #{regression_forward.1}
  #allocation0 [shape = 'u32[]', space=smem, size = 0x4, offset = 0x4, fixed_abs, tag = 'smem constant byte address 0x4 - core index']
  #allocation1 [shape = 'u32[144,128]{1,0:T(1,128)}', space=vmem, size = 0x12000, scoped, tag = 'internal scratch']
  #allocation2 [shape = 'f32[1,1]{1,0:T(1,128)S(1)}', space=vmem, size = 0x200, scoped, tag = 'scoped memory for regression_forward.1']
  %s0 = inlined_call_operand.vmem [shape: f32[8,64], index: 0, kind: input, shape index: {}]
  %s1 = inlined_call_operand.vmem [shape: f32[64,128], index: 1, kind: input, shape index: {}]
  %s2 = inlined_call_operand.vmem [shape: f32[1,128], index: 2, kind: input, shape index: {}]
  %s3 = inlined_call_operand.vmem [shape: f32[128,128], index: 3, kind: input, shape index: {}]
  %s4 = inlined_call_operand.vmem [shape: f32[1,128], index: 4, kind: input, shape index: {}]
  %s5 = inlined_call_operand.vmem [shape: f32[128,128], index: 5, kind: input, shape index: {}]
  %s6 = inlined_call_operand.vmem [shape: f32[1,128], index: 6, kind: input, shape index: {}]
  %s7 = inlined_call_operand.vmem [shape: f32[128,64], index: 7, kind: input, shape index: {}]
  %s8 = inlined_call_operand.vmem [shape: f32[1,64], index: 8, kind: input, shape index: {}]
  %s9 = inlined_call_operand.vmem [shape: f32[1,64], index: 9, kind: input, shape index: {}]
  %s10 = inlined_call_operand.<no memory space> [shape: f32[1,1], index: 10, kind: input, shape index: {}]
  %s11 = inlined_call_operand.vmem [shape: f32[8,1], index: 11, kind: output, shape index: {}]
  %s12 = sld [smem:[#allocation0]]
  $region54: #{regression_forward.1} parent=0
    _
  %s14 = ssub.s32 1, %s12
  %s15 = scalar_select 0, %s14, %s12
  %v16 = vstv %s10
  %17 = vst [vmem:[#allocation2] sm:$0x1] %v16
  // Predicated region
  $region2: #{regression_forward.1} parent=0 // pred_check
    _
  $region3: #{regression_forward.1} parent=0 // pred_check_branch
    %19 = sbr.rel (0) target = $region5
  $region4: #{regression_forward.1} parent=0 // pred_region
    _
  $region5: #{regression_forward.1} parent=0 // pred_fallthru
    _
  // Predicated region
  $region6: #{regression_forward.1} parent=0 // pred_check
    _
  $region7: #{regression_forward.1} parent=0 // pred_check_branch
    %21 = sbr.rel (0) target = $region9
  $region8: #{regression_forward.1} parent=0 // pred_region
    _
  $region9: #{regression_forward.1} parent=0 // pred_fallthru
    _
  // Predicated region
  $region10: #{regression_forward.1} parent=0 // pred_check
    _
  $region11: #{regression_forward.1} parent=0 // pred_check_branch
    %23 = sbr.rel (0) target = $region13
  $region12: #{regression_forward.1} parent=0 // pred_region
    _
  $region13: #{regression_forward.1} parent=0 // pred_fallthru
    _
  // Predicated region
  $region14: #{regression_forward.1} parent=0 // pred_check
    _
  $region15: #{regression_forward.1} parent=0 // pred_check_branch
    %25 = sbr.rel (0) target = $region17
  $region16: #{regression_forward.1} parent=0 // pred_region
    _
  $region17: #{regression_forward.1} parent=0 // pred_fallthru
    _
  // Predicated region
  $region18: #{regression_forward.1} parent=0 // pred_check
    _
  $region19: #{regression_forward.1} parent=0 // pred_check_branch
    %27 = sbr.rel (0) target = $region21
  $region20: #{regression_forward.1} parent=0 // pred_region
    _
  $region21: #{regression_forward.1} parent=0 // pred_fallthru
    _
  // Predicated region
  $region22: #{regression_forward.1} parent=0 // pred_check
    _
  $region23: #{regression_forward.1} parent=0 // pred_check_branch
    %29 = sbr.rel (0) target = $region25
  $region24: #{regression_forward.1} parent=0 // pred_region
    _
  $region25: #{regression_forward.1} parent=0 // pred_fallthru
    _
  // Predicated region
  $region26: #{regression_forward.1} parent=0 // pred_check
    _
  $region27: #{regression_forward.1} parent=0 // pred_check_branch
    %31 = sbr.rel (0) target = $region29
  $region28: #{regression_forward.1} parent=0 // pred_region
    _
  $region29: #{regression_forward.1} parent=0 // pred_fallthru
    _
  // Predicated region
  $region30: #{regression_forward.1} parent=0 // pred_check
    _
  $region31: #{regression_forward.1} parent=0 // pred_check_branch
    %33 = sbr.rel (0) target = $region33
  $region32: #{regression_forward.1} parent=0 // pred_region
    _
  $region33: #{regression_forward.1} parent=0 // pred_fallthru
    _
  // Predicated region
  $region34: #{regression_forward.1} parent=0 // pred_check
    _
  $region35: #{regression_forward.1} parent=0 // pred_check_branch
    %35 = sbr.rel (0) target = $region37
  $region36: #{regression_forward.1} parent=0 // pred_region
    _
  $region37: #{regression_forward.1} parent=0 // pred_fallthru
    _
  // Predicated region
  $region38: #{regression_forward.1} parent=0 // pred_check
    _
  $region39: #{regression_forward.1} parent=0 // pred_check_branch
    %37 = sbr.rel (0) target = $region41
  $region40: #{regression_forward.1} parent=0 // pred_region
    _
  $region41: #{regression_forward.1} parent=0 // pred_fallthru
    _
  // Predicated region
  $region42: #{regression_forward.1} parent=0 // pred_check
    _
  $region43: #{regression_forward.1} parent=0 // pred_check_branch
    %39 = sbr.rel (0) target = $region45
  $region44: #{regression_forward.1} parent=0 // pred_region
    _
  $region45: #{regression_forward.1} parent=0 // pred_fallthru
    _
  %v40 = vld [vmem:[%s0] sm:$0xff]
  %v41 = vld [vmem:[%s1] sm:$0xff]
  %v42 = vld [vmem:[%s1 + $0x8] sm:$0xff]
  %v43 = vld [vmem:[%s1 + $0x10] sm:$0xff]
  %v44 = vld [vmem:[%s1 + $0x18] sm:$0xff]
  %v45 = vld [vmem:[%s1 + $0x20] sm:$0xff]
  %v46 = vld [vmem:[%s1 + $0x28] sm:$0xff]
  %v47 = vld [vmem:[%s1 + $0x30] sm:$0xff]
  %v48 = vld [vmem:[%s1 + $0x38] sm:$0xff]
  %v49 = vld [vmem:[%s2] sm:$0x1]
  %v51 = vlaneseq
  %v52 = vshrl.u32 %v51, 7
  %v53 = vsub.s32 0, %v52
  %v54 = vrot.slane %v49, %v53
  %vm56 = vcmask 523264
  %v58 = vsel %vm56, %v40, 0
  %60 = vmatprep.subr.mxu0 0.0
  %61 = vmatpush1.msra.mxu0 %v41
  %62 = vmatprep.subr.mxu0 0.0
  %63 = vmatpush1.msra.mxu0 %v42
  %64 = vmatprep.subr.mxu0 0.0
  %65 = vmatpush1.msra.mxu0 %v43
  %66 = vmatprep.subr.mxu0 0.0
  %67 = vmatpush1.msra.mxu0 %v44
  %68 = vmatprep.subr.mxu0 0.0
  %69 = vmatpush1.msra.mxu0 %v45
  %70 = vmatprep.subr.mxu0 0.0
  %71 = vmatpush1.msra.mxu0 %v46
  %72 = vmatprep.subr.mxu0 0.0
  %73 = vmatpush1.msra.mxu0 %v47
  %74 = vmatprep.subr.mxu0 0.0
  %75 = vmatpush1.msra.mxu0 %v48
  %76 = vmatprep.subr.mxu0 0.0
  %77 = vmatpush1.msra.mxu0 0.0
  %78 = vmatprep.subr.mxu0 0.0
  %79 = vmatpush1.msra.mxu0 0.0
  %80 = vmatprep.subr.mxu0 0.0
  %81 = vmatpush1.msra.mxu0 0.0
  %82 = vmatprep.subr.mxu0 0.0
  %83 = vmatpush1.msra.mxu0 0.0
  %84 = vmatprep.subr.mxu0 0.0
  %85 = vmatpush1.msra.mxu0 0.0
  %86 = vmatprep.subr.mxu0 0.0
  %87 = vmatpush1.msra.mxu0 0.0
  %88 = vmatprep.subr.mxu0 0.0
  %89 = vmatpush1.msra.mxu0 0.0
  %90 = vmatprep.subr.mxu0 0.0
  %91 = vmatpush1.msra.mxu0 0.0
  %92 = vmatprep.subr.mxu0 0.0
  %93 = vmatpush1.msra.mxu0 0.0
  %94 = vmatprep.subr.mxu0 0.0
  %95 = vmatpush1.msra.mxu0 0.0
  %96 = vmatprep.subr.mxu0 0.0
  %97 = vmatpush1.msra.mxu0 0.0
  %98 = vmatprep.subr.mxu0 0.0
  %99 = vmatpush1.msra.mxu0 0.0
  %100 = vmatprep.subr.mxu0 0.0
  %101 = vmatpush1.msra.mxu0 0.0
  %102 = vmatprep.subr.mxu0 0.0
  %103 = vmatpush1.msra.mxu0 0.0
  %104 = vmatprep.subr.mxu0 0.0
  %105 = vmatpush1.msra.mxu0 0.0
  %106 = vmatprep.subr.mxu0 0.0
  %107 = vmatpush1.msra.mxu0 0.0
  %108 = vmatprep.subr.mxu0 0.0
  %109 = vmatpush1.msra.mxu0 0.0
  %110 = vmatprep.subr.mxu0 0.0
  %111 = vmatpush1.msra.mxu0 0.0
  %112 = vmatprep.subr.mxu0 0.0
  %113 = vmatpush1.msra.mxu0 0.0
  %114 = vmatprep.subr.mxu0 0.0
  %115 = vmatpush1.msra.mxu0 0.0
  %116 = vmatprep.subr.mxu0 0.0
  %117 = vmatpush1.msra.mxu0 0.0
  %118 = vmatprep.subr.mxu0 0.0
  %119 = vmatpush1.msra.mxu0 0.0
  %120 = vmatprep.subr.mxu0 0.0
  %121 = vmatpush1.msra.mxu0 0.0
  %122 = vmatprep.subr.mxu0 0.0
  %123 = vmatpush1.msra.mxu0 0.0
  %124 = vmatprep.mubr.f32.mxu0 0.0
  %125 = vmatmul.mubr.f32.gmra.mrb[0].mxu0 %v58
  %v126 = vpop.f32.mrb[0].mxu0
  %v127 = vadd.f32 %v54, %v126
  %v128 = vpop.f32.mrb[0].mxu0
  %129 = vdwg.mxu0
  %vm130 = vcmp.gt.f32.partialorder %v127, 0.0
  %v131 = vmul.f32 %v127, 0.01
  %v132 = vsel %vm130, %v127, %v131
  %v133 = vld [vmem:[%s3] sm:$0xff]
  %v134 = vld [vmem:[%s3 + $0x8] sm:$0xff]
  %v135 = vld [vmem:[%s3 + $0x10] sm:$0xff]
  %v136 = vld [vmem:[%s3 + $0x18] sm:$0xff]
  %v137 = vld [vmem:[%s3 + $0x20] sm:$0xff]
  %v138 = vld [vmem:[%s3 + $0x28] sm:$0xff]
  %v139 = vld [vmem:[%s3 + $0x30] sm:$0xff]
  %v140 = vld [vmem:[%s3 + $0x38] sm:$0xff]
  %v141 = vld [vmem:[%s3 + $0x40] sm:$0xff]
  %v142 = vld [vmem:[%s3 + $0x48] sm:$0xff]
  %v143 = vld [vmem:[%s3 + $0x50] sm:$0xff]
  %v144 = vld [vmem:[%s3 + $0x58] sm:$0xff]
  %v145 = vld [vmem:[%s3 + $0x60] sm:$0xff]
  %v146 = vld [vmem:[%s3 + $0x68] sm:$0xff]
  %v147 = vld [vmem:[%s3 + $0x70] sm:$0xff]
  %v148 = vld [vmem:[%s3 + $0x78] sm:$0xff]
  %v149 = vld [vmem:[%s4] sm:$0x1]
  %v151 = vlaneseq
  %v152 = vshrl.u32 %v151, 7
  %v153 = vsub.s32 0, %v152
  %v154 = vrot.slane %v149, %v153
  %156 = vmatprep.subr.mxu0 0.0
  %157 = vmatpush1.msra.mxu0 %v133
  %158 = vmatprep.subr.mxu0 0.0
  %159 = vmatpush1.msra.mxu0 %v134
  %160 = vmatprep.subr.mxu0 0.0
  %161 = vmatpush1.msra.mxu0 %v135
  %162 = vmatprep.subr.mxu0 0.0
  %163 = vmatpush1.msra.mxu0 %v136
  %164 = vmatprep.subr.mxu0 0.0
  %165 = vmatpush1.msra.mxu0 %v137
  %166 = vmatprep.subr.mxu0 0.0
  %167 = vmatpush1.msra.mxu0 %v138
  %168 = vmatprep.subr.mxu0 0.0
  %169 = vmatpush1.msra.mxu0 %v139
  %170 = vmatprep.subr.mxu0 0.0
  %171 = vmatpush1.msra.mxu0 %v140
  %172 = vmatprep.subr.mxu0 0.0
  %173 = vmatpush1.msra.mxu0 %v141
  %174 = vmatprep.subr.mxu0 0.0
  %175 = vmatpush1.msra.mxu0 %v142
  %176 = vmatprep.subr.mxu0 0.0
  %177 = vmatpush1.msra.mxu0 %v143
  %178 = vmatprep.subr.mxu0 0.0
  %179 = vmatpush1.msra.mxu0 %v144
  %180 = vmatprep.subr.mxu0 0.0
  %181 = vmatpush1.msra.mxu0 %v145
  %182 = vmatprep.subr.mxu0 0.0
  %183 = vmatpush1.msra.mxu0 %v146
  %184 = vmatprep.subr.mxu0 0.0
  %185 = vmatpush1.msra.mxu0 %v147
  %186 = vmatprep.subr.mxu0 0.0
  %187 = vmatpush1.msra.mxu0 %v148
  %188 = vmatprep.subr.mxu0 0.0
  %189 = vmatpush1.msra.mxu0 0.0
  %190 = vmatprep.subr.mxu0 0.0
  %191 = vmatpush1.msra.mxu0 0.0
  %192 = vmatprep.subr.mxu0 0.0
  %193 = vmatpush1.msra.mxu0 0.0
  %194 = vmatprep.subr.mxu0 0.0
  %195 = vmatpush1.msra.mxu0 0.0
  %196 = vmatprep.subr.mxu0 0.0
  %197 = vmatpush1.msra.mxu0 0.0
  %198 = vmatprep.subr.mxu0 0.0
  %199 = vmatpush1.msra.mxu0 0.0
  %200 = vmatprep.subr.mxu0 0.0
  %201 = vmatpush1.msra.mxu0 0.0
  %202 = vmatprep.subr.mxu0 0.0
  %203 = vmatpush1.msra.mxu0 0.0
  %204 = vmatprep.subr.mxu0 0.0
  %205 = vmatpush1.msra.mxu0 0.0
  %206 = vmatprep.subr.mxu0 0.0
  %207 = vmatpush1.msra.mxu0 0.0
  %208 = vmatprep.subr.mxu0 0.0
  %209 = vmatpush1.msra.mxu0 0.0
  %210 = vmatprep.subr.mxu0 0.0
  %211 = vmatpush1.msra.mxu0 0.0
  %212 = vmatprep.subr.mxu0 0.0
  %213 = vmatpush1.msra.mxu0 0.0
  %214 = vmatprep.subr.mxu0 0.0
  %215 = vmatpush1.msra.mxu0 0.0
  %216 = vmatprep.subr.mxu0 0.0
  %217 = vmatpush1.msra.mxu0 0.0
  %218 = vmatprep.subr.mxu0 0.0
  %219 = vmatpush1.msra.mxu0 0.0
  %220 = vmatprep.mubr.f32.mxu0 0.0
  %221 = vmatmul.mubr.f32.gmra.mrb[0].mxu0 %v132
  %v222 = vpop.f32.mrb[0].mxu0
  %v223 = vadd.f32 %v154, %v222
  %v224 = vpop.f32.mrb[0].mxu0
  %225 = vdwg.mxu0
  %vm226 = vcmp.gt.f32.partialorder %v223, 0.0
  %v227 = vmul.f32 %v223, 0.01
  %v228 = vsel %vm226, %v223, %v227
  %v229 = vld [vmem:[%s5] sm:$0xff]
  %v230 = vld [vmem:[%s5 + $0x8] sm:$0xff]
  %v231 = vld [vmem:[%s5 + $0x10] sm:$0xff]
  %v232 = vld [vmem:[%s5 + $0x18] sm:$0xff]
  %v233 = vld [vmem:[%s5 + $0x20] sm:$0xff]
  %v234 = vld [vmem:[%s5 + $0x28] sm:$0xff]
  %v235 = vld [vmem:[%s5 + $0x30] sm:$0xff]
  %v236 = vld [vmem:[%s5 + $0x38] sm:$0xff]
  %v237 = vld [vmem:[%s5 + $0x40] sm:$0xff]
  %v238 = vld [vmem:[%s5 + $0x48] sm:$0xff]
  %v239 = vld [vmem:[%s5 + $0x50] sm:$0xff]
  %v240 = vld [vmem:[%s5 + $0x58] sm:$0xff]
  %v241 = vld [vmem:[%s5 + $0x60] sm:$0xff]
  %v242 = vld [vmem:[%s5 + $0x68] sm:$0xff]
  %v243 = vld [vmem:[%s5 + $0x70] sm:$0xff]
  %v244 = vld [vmem:[%s5 + $0x78] sm:$0xff]
  %v245 = vld [vmem:[%s6] sm:$0x1]
  %v247 = vlaneseq
  %v248 = vshrl.u32 %v247, 7
  %v249 = vsub.s32 0, %v248
  %v250 = vrot.slane %v245, %v249
  %252 = vmatprep.subr.mxu0 0.0
  %253 = vmatpush1.msra.mxu0 %v229
  %254 = vmatprep.subr.mxu0 0.0
  %255 = vmatpush1.msra.mxu0 %v230
  %256 = vmatprep.subr.mxu0 0.0
  %257 = vmatpush1.msra.mxu0 %v231
  %258 = vmatprep.subr.mxu0 0.0
  %259 = vmatpush1.msra.mxu0 %v232
  %260 = vmatprep.subr.mxu0 0.0
  %261 = vmatpush1.msra.mxu0 %v233
  %262 = vmatprep.subr.mxu0 0.0
  %263 = vmatpush1.msra.mxu0 %v234
  %264 = vmatprep.subr.mxu0 0.0
  %265 = vmatpush1.msra.mxu0 %v235
  %266 = vmatprep.subr.mxu0 0.0
  %267 = vmatpush1.msra.mxu0 %v236
  %268 = vmatprep.subr.mxu0 0.0
  %269 = vmatpush1.msra.mxu0 %v237
  %270 = vmatprep.subr.mxu0 0.0
  %271 = vmatpush1.msra.mxu0 %v238
  %272 = vmatprep.subr.mxu0 0.0
  %273 = vmatpush1.msra.mxu0 %v239
  %274 = vmatprep.subr.mxu0 0.0
  %275 = vmatpush1.msra.mxu0 %v240
  %276 = vmatprep.subr.mxu0 0.0
  %277 = vmatpush1.msra.mxu0 %v241
  %278 = vmatprep.subr.mxu0 0.0
  %279 = vmatpush1.msra.mxu0 %v242
  %280 = vmatprep.subr.mxu0 0.0
  %281 = vmatpush1.msra.mxu0 %v243
  %282 = vmatprep.subr.mxu0 0.0
  %283 = vmatpush1.msra.mxu0 %v244
  %284 = vmatprep.subr.mxu0 0.0
  %285 = vmatpush1.msra.mxu0 0.0
  %286 = vmatprep.subr.mxu0 0.0
  %287 = vmatpush1.msra.mxu0 0.0
  %288 = vmatprep.subr.mxu0 0.0
  %289 = vmatpush1.msra.mxu0 0.0
  %290 = vmatprep.subr.mxu0 0.0
  %291 = vmatpush1.msra.mxu0 0.0
  %292 = vmatprep.subr.mxu0 0.0
  %293 = vmatpush1.msra.mxu0 0.0
  %294 = vmatprep.subr.mxu0 0.0
  %295 = vmatpush1.msra.mxu0 0.0
  %296 = vmatprep.subr.mxu0 0.0
  %297 = vmatpush1.msra.mxu0 0.0
  %298 = vmatprep.subr.mxu0 0.0
  %299 = vmatpush1.msra.mxu0 0.0
  %300 = vmatprep.subr.mxu0 0.0
  %301 = vmatpush1.msra.mxu0 0.0
  %302 = vmatprep.subr.mxu0 0.0
  %303 = vmatpush1.msra.mxu0 0.0
  %304 = vmatprep.subr.mxu0 0.0
  %305 = vmatpush1.msra.mxu0 0.0
  %306 = vmatprep.subr.mxu0 0.0
  %307 = vmatpush1.msra.mxu0 0.0
  %308 = vmatprep.subr.mxu0 0.0
  %309 = vmatpush1.msra.mxu0 0.0
  %310 = vmatprep.subr.mxu0 0.0
  %311 = vmatpush1.msra.mxu0 0.0
  %312 = vmatprep.subr.mxu0 0.0
  %313 = vmatpush1.msra.mxu0 0.0
  %314 = vmatprep.subr.mxu0 0.0
  %315 = vmatpush1.msra.mxu0 0.0
  %316 = vmatprep.mubr.f32.mxu0 0.0
  %317 = vmatmul.mubr.f32.gmra.mrb[0].mxu0 %v228
  %v318 = vpop.f32.mrb[0].mxu0
  %v319 = vadd.f32 %v250, %v318
  %v320 = vpop.f32.mrb[0].mxu0
  %321 = vdwg.mxu0
  %vm322 = vcmp.gt.f32.partialorder %v319, 0.0
  %v323 = vmul.f32 %v319, 0.01
  %v324 = vsel %vm322, %v319, %v323
  %v325 = vld [vmem:[%s7] sm:$0xff]
  %v326 = vld [vmem:[%s7 + $0x8] sm:$0xff]
  %v327 = vld [vmem:[%s7 + $0x10] sm:$0xff]
  %v328 = vld [vmem:[%s7 + $0x18] sm:$0xff]
  %v329 = vld [vmem:[%s7 + $0x20] sm:$0xff]
  %v330 = vld [vmem:[%s7 + $0x28] sm:$0xff]
  %v331 = vld [vmem:[%s7 + $0x30] sm:$0xff]
  %v332 = vld [vmem:[%s7 + $0x38] sm:$0xff]
  %v333 = vld [vmem:[%s7 + $0x40] sm:$0xff]
  %v334 = vld [vmem:[%s7 + $0x48] sm:$0xff]
  %v335 = vld [vmem:[%s7 + $0x50] sm:$0xff]
  %v336 = vld [vmem:[%s7 + $0x58] sm:$0xff]
  %v337 = vld [vmem:[%s7 + $0x60] sm:$0xff]
  %v338 = vld [vmem:[%s7 + $0x68] sm:$0xff]
  %v339 = vld [vmem:[%s7 + $0x70] sm:$0xff]
  %v340 = vld [vmem:[%s7 + $0x78] sm:$0xff]
  %v341 = vld [vmem:[%s8] sm:$0x1]
  %v343 = vlaneseq
  %v344 = vshrl.u32 %v343, 7
  %v345 = vsub.s32 0, %v344
  %v346 = vrot.slane %v341, %v345
  %348 = vmatprep.subr.mxu0 0.0
  %349 = vmatpush1.msra.mxu0 %v325
  %350 = vmatprep.subr.mxu0 0.0
  %351 = vmatpush1.msra.mxu0 %v326
  %352 = vmatprep.subr.mxu0 0.0
  %353 = vmatpush1.msra.mxu0 %v327
  %354 = vmatprep.subr.mxu0 0.0
  %355 = vmatpush1.msra.mxu0 %v328
  %356 = vmatprep.subr.mxu0 0.0
  %357 = vmatpush1.msra.mxu0 %v329
  %358 = vmatprep.subr.mxu0 0.0
  %359 = vmatpush1.msra.mxu0 %v330
  %360 = vmatprep.subr.mxu0 0.0
  %361 = vmatpush1.msra.mxu0 %v331
  %362 = vmatprep.subr.mxu0 0.0
  %363 = vmatpush1.msra.mxu0 %v332
  %364 = vmatprep.subr.mxu0 0.0
  %365 = vmatpush1.msra.mxu0 %v333
  %366 = vmatprep.subr.mxu0 0.0
  %367 = vmatpush1.msra.mxu0 %v334
  %368 = vmatprep.subr.mxu0 0.0
  %369 = vmatpush1.msra.mxu0 %v335
  %370 = vmatprep.subr.mxu0 0.0
  %371 = vmatpush1.msra.mxu0 %v336
  %372 = vmatprep.subr.mxu0 0.0
  %373 = vmatpush1.msra.mxu0 %v337
  %374 = vmatprep.subr.mxu0 0.0
  %375 = vmatpush1.msra.mxu0 %v338
  %376 = vmatprep.subr.mxu0 0.0
  %377 = vmatpush1.msra.mxu0 %v339
  %378 = vmatprep.subr.mxu0 0.0
  %379 = vmatpush1.msra.mxu0 %v340
  %380 = vmatprep.subr.mxu0 0.0
  %381 = vmatpush1.msra.mxu0 0.0
  %382 = vmatprep.subr.mxu0 0.0
  %383 = vmatpush1.msra.mxu0 0.0
  %384 = vmatprep.subr.mxu0 0.0
  %385 = vmatpush1.msra.mxu0 0.0
  %386 = vmatprep.subr.mxu0 0.0
  %387 = vmatpush1.msra.mxu0 0.0
  %388 = vmatprep.subr.mxu0 0.0
  %389 = vmatpush1.msra.mxu0 0.0
  %390 = vmatprep.subr.mxu0 0.0
  %391 = vmatpush1.msra.mxu0 0.0
  %392 = vmatprep.subr.mxu0 0.0
  %393 = vmatpush1.msra.mxu0 0.0
  %394 = vmatprep.subr.mxu0 0.0
  %395 = vmatpush1.msra.mxu0 0.0
  %396 = vmatprep.subr.mxu0 0.0
  %397 = vmatpush1.msra.mxu0 0.0
  %398 = vmatprep.subr.mxu0 0.0
  %399 = vmatpush1.msra.mxu0 0.0
  %400 = vmatprep.subr.mxu0 0.0
  %401 = vmatpush1.msra.mxu0 0.0
  %402 = vmatprep.subr.mxu0 0.0
  %403 = vmatpush1.msra.mxu0 0.0
  %404 = vmatprep.subr.mxu0 0.0
  %405 = vmatpush1.msra.mxu0 0.0
  %406 = vmatprep.subr.mxu0 0.0
  %407 = vmatpush1.msra.mxu0 0.0
  %408 = vmatprep.subr.mxu0 0.0
  %409 = vmatpush1.msra.mxu0 0.0
  %410 = vmatprep.subr.mxu0 0.0
  %411 = vmatpush1.msra.mxu0 0.0
  %412 = vmatprep.mubr.f32.mxu0 0.0
  %413 = vmatmul.mubr.f32.gmra.mrb[0].mxu0 %v324
  %v414 = vpop.f32.mrb[0].mxu0
  %v415 = vadd.f32 %v346, %v414
  %v416 = vpop.f32.mrb[0].mxu0
  %417 = vdwg.mxu0
  %vm418 = vcmp.gt.f32.partialorder %v415, 0.0
  %v419 = vmul.f32 %v415, 0.01
  %v420 = vsel %vm418, %v415, %v419
  %v421 = vld [vmem:[%s9] sm:$0x1]
  %v423 = vlaneseq
  %v424 = vshrl.u32 %v423, 7
  %v425 = vsub.s32 0, %v424
  %v426 = vrot.slane %v421, %v425
  %v428 = vmul.f32 %v420, %v426
  %v429 = vsel %vm56, %v428, 0.0
  %430 = vadd.xlane.f32.xlu0 %v429
  %v431 = vpop.xlane.xlu0 %430
  %v432 = vld [vmem:[#allocation2] sm:$0x1]
  %v434 = vlaneseq
  %v435 = vshrl.u32 %v434, 7
  %v436 = vsub.s32 0, %v435
  %v437 = vrot.slane %v432, %v436
  %v439 = vadd.f32 %v431, %v437
  %vm440 = vcmask 7168
  %441 = vst.msk [vmem:[%s11] sm:$0xff] %vm440, %v439
  // Predicated region
  $region46: #{regression_forward.1} parent=0 // pred_check
    _
  $region47: #{regression_forward.1} parent=0 // pred_check_branch
    %443 = sbr.rel (0) target = $region49
  $region48: #{regression_forward.1} parent=0 // pred_region
    _
  $region49: #{regression_forward.1} parent=0 // pred_fallthru
    _
  // Predicated region
  $region50: #{regression_forward.1} parent=0 // pred_check
    _
  $region51: #{regression_forward.1} parent=0 // pred_check_branch
    %445 = sbr.rel (0) target = $region53
  $region52: #{regression_forward.1} parent=0 // pred_region
    _
  $region53: #{regression_forward.1} parent=0 // pred_fallthru
    _

</llo_original>
